<compile_context>
chip_gen: v6e
topology: v6e:2x2x1
jax: 0.10.0
libtpu: 0.0.40
codegen_flags: <defaults>
</compile_context>

<pallas_src>
import functools

import jax
import jax.numpy as jnp
from jax.experimental import pallas as pl
from jax.experimental.pallas import tpu as pltpu


def _round_up(x, m):
    return (x + m - 1) // m * m


# ----------------------------------------------------------------------------
# Pallas kernel: tiled-reduction tile encoding
#   acc[b]  = sum_over_patch_tiles( sum_rows( GELU(x_tile @ W1 + b1) ) )
#   feat[b] = (acc[b] / n_patches) @ W2 + b2      (written on the last k step)
# ----------------------------------------------------------------------------
def _tile_encoder_kernel(x_ref, w1_ref, b1_ref, w2_ref, b2_ref, out_ref, acc_ref,
                         *, n_patches, tile_n, inv_n):
    # x_ref   : (1, TILE_N, Kp)   bf16 patch tile for one batch element
    # w1_ref  : (Kp, Dp)          bf16 patch-embedding weight
    # b1_ref  : (1, Dp)           f32
    # w2_ref  : (Dp, Doutp)       f32 projection head weight
    # b2_ref  : (1, Doutp)        f32
    # out_ref : (1, 1, Doutp)     f32 per-tile feature (written at k == last)
    # acc_ref : (1, Dp)           f32 pooled-sum accumulator (scratch)
    k = pl.program_id(1)

    @pl.when(k == 0)
    def _():
        acc_ref[...] = jnp.zeros_like(acc_ref)

    x = x_ref[0]                                                 # (TILE_N, Kp) bf16
    h = jnp.dot(x, w1_ref[...], preferred_element_type=jnp.float32)
    # NOTE: tanh GELU == PyTorch nn.GELU(approximate='tanh'); the base class's
    # tile encoder is abstract, so the exact erf flavor is not pinned by spec.
    h = jax.nn.gelu(h + b1_ref[...], approximate=True)           # (TILE_N, Dp) f32

    # Mask patch rows past the true patch count (zero-padded in the wrapper),
    # then accumulate the pooled sum in f32 scratch.
    row = jax.lax.broadcasted_iota(jnp.int32, (tile_n, 1), 0)
    valid = (k * tile_n + row) < n_patches
    h = jnp.where(valid, h, 0.0)
    acc_ref[...] += jnp.sum(h, axis=0, keepdims=True)            # (1, Dp)

    @pl.when(k == pl.num_programs(1) - 1)
    def _():
        pooled = acc_ref[...] * inv_n                            # (1, Dp)
        feat = jnp.dot(pooled, w2_ref[...],
                       preferred_element_type=jnp.float32) + b2_ref[...]
        out_ref[0] = feat                                        # (1, Doutp), lane-dense


def slide_feature_extractor_forward(x_nchw, params, *, patch_size, tile_n_max=512):
    """Equivalent of SlideFeatureExtractor.forward(x) = tile_encoder(x)."""
    w1, b1, w2, b2 = params["w1"], params["b1"], params["w2"], params["b2"]
    B, C, H, W = x_nchw.shape
    p = patch_size
    assert H % p == 0 and W % p == 0
    nh, nw = H // p, W // p
    n_patches = nh * nw
    patch_dim = C * p * p
    D = w1.shape[1]
    Dout = w2.shape[1]

    # Lane-aligned (multiple-of-128) padded dims.
    Kp = _round_up(patch_dim, 128)
    Dp = _round_up(D, 128)
    Doutp = _round_up(Dout, 128)

    # TODO(synk): for whole-slide-size inputs, fuse this NCHW->patch
    # rearrangement into the kernel grid to avoid an extra HBM round-trip;
    # done on the host here for clarity at demo scale.
    patches = x_nchw.reshape(B, C, nh, p, nw, p)
    patches = patches.transpose(0, 2, 4, 1, 3, 5)                # B, nh, nw, C, p, p
    patches = patches.reshape(B, n_patches, patch_dim)

    # Patch-tile size (MXU M dimension) chosen under an ~8 MiB double-buffer
    # budget; rounded to sublane multiples.
    budget = 8 << 20
    tile_n = min(tile_n_max, max(8, (budget // (2 * Kp * 2)) // 8 * 8))
    tile_n = min(tile_n, _round_up(n_patches, 8))
    n_pad = _round_up(n_patches, tile_n)
    n_tiles = n_pad // tile_n

    # Pad + cast. Large operands (patches, W1) in bf16; small ones in f32.
    patches_p = jnp.zeros((B, n_pad, Kp), jnp.bfloat16)
    patches_p = patches_p.at[:, :n_patches, :patch_dim].set(
        patches.astype(jnp.bfloat16))
    w1_p = jnp.zeros((Kp, Dp), jnp.bfloat16).at[:patch_dim, :D].set(
        w1.astype(jnp.bfloat16))
    b1_p = jnp.zeros((1, Dp), jnp.float32).at[:, :D].set(b1.astype(jnp.float32))
    w2_p = jnp.zeros((Dp, Doutp), jnp.float32).at[:D, :Dout].set(
        w2.astype(jnp.float32))
    b2_p = jnp.zeros((1, Doutp), jnp.float32).at[:, :Dout].set(
        b2.astype(jnp.float32))

    kernel = functools.partial(
        _tile_encoder_kernel,
        n_patches=n_patches, tile_n=tile_n, inv_n=1.0 / float(n_patches))

    # Advisory cost estimate for XLA scheduling around the custom call.
    flops = 2 * B * n_pad * Kp * Dp + 2 * B * n_pad * Dp + 2 * B * Dp * Doutp
    transcendentals = B * n_pad * Dp
    bytes_accessed = (B * n_pad * Kp * 2 + Kp * Dp * 2 + Dp * 4
                      + Dp * Doutp * 4 + Doutp * 4 + B * Doutp * 4)

    # Explicit VMEM budget (double-buffered inputs + scratch), capped safely
    # below v7x's 64 MiB physical VMEM; raises v5e's 16 MiB scoped default.
    footprint = (2 * tile_n * Kp * 2        # patch tile, bf16, double-buffered
                 + 2 * Kp * Dp * 2          # W1 bf16
                 + 2 * 8 * Dp * 4           # b1 (sublane-padded)
                 + 2 * Dp * Doutp * 4       # W2
                 + 2 * 8 * Doutp * 4        # b2
                 + 2 * 8 * Doutp * 4        # output block
                 + 8 * Dp * 4)              # accumulator scratch
    vmem_limit = int(min(48 * 1024 * 1024, max(32 * 1024 * 1024, 2 * footprint)))

    out = pl.pallas_call(
        kernel,
        out_shape=jax.ShapeDtypeStruct((B, 1, Doutp), jnp.float32),
        grid_spec=pltpu.PrefetchScalarGridSpec(
            num_scalar_prefetch=0,
            grid=(B, n_tiles),
            in_specs=[
                pl.BlockSpec((1, tile_n, Kp), lambda b, k: (b, k, 0)),
                pl.BlockSpec((Kp, Dp), lambda b, k: (0, 0)),
                pl.BlockSpec((1, Dp), lambda b, k: (0, 0)),
                pl.BlockSpec((Dp, Doutp), lambda b, k: (0, 0)),
                pl.BlockSpec((1, Doutp), lambda b, k: (0, 0)),
            ],
            out_specs=pl.BlockSpec((1, 1, Doutp), lambda b, k: (b, 0, 0)),
            scratch_shapes=[pltpu.VMEM((1, Dp), jnp.float32)],
        ),
        compiler_params=pltpu.CompilerParams(
            dimension_semantics=("parallel", "arbitrary"),
            vmem_limit_bytes=vmem_limit,
        ),
        cost_estimate=pl.CostEstimate(
            flops=int(flops),
            transcendentals=int(transcendentals),
            bytes_accessed=int(bytes_accessed),
        ),
    )(patches_p, w1_p, b1_p, w2_p, b2_p)

    # Strip lane padding -> (B, Dout)
    return out.reshape(B, Doutp)[:, :Dout]


def init_params(key, patch_dim, hidden, out_dim):
    """Deterministic synthetic parameters (frozen, like requires_grad=False)."""
    k1, k2, k3, k4 = jax.random.split(key, 4)
    w1 = jax.random.normal(k1, (patch_dim, hidden), jnp.float32) * 0.02
    b1 = jax.random.normal(k2, (1, hidden), jnp.float32) * 0.01
    w2 = jax.random.normal(k3, (hidden, out_dim), jnp.float32) * 0.02
    b2 = jax.random.normal(k4, (1, out_dim), jnp.float32) * 0.01
    return {"w1": w1, "b1": b1, "w2": w2, "b2": b2}


if __name__ == "__main__":
    # Small shapes consistent with the module's forward: image batch NCHW.
    B, C, H, W = 2, 4, 16, 16
    patch_size = 4
    hidden = 32
    out_dim = 32
    patch_dim = C * patch_size * patch_size  # 64

    key = jax.random.PRNGKey(0)
    kx, kp = jax.random.split(key)
    x = jax.random.normal(kx, (B, C, H, W), jnp.float32)
    params = init_params(kp, patch_dim, hidden, out_dim)

    feats = slide_feature_extractor_forward(x, params, patch_size=patch_size)
    feats = jax.block_until_ready(feats)

    # Pure-JAX reference of the same synthetic tile encoder (same bf16 casts
    # for the large operands; pooling hoisted before W2 is an exact identity).
    nh, nw = H // patch_size, W // patch_size
    patches = x.reshape(B, C, nh, patch_size, nw, patch_size)
    patches = patches.transpose(0, 2, 4, 1, 3, 5).reshape(B, nh * nw, patch_dim)
    pb = patches.astype(jnp.bfloat16).astype(jnp.float32)
    w1b = params["w1"].astype(jnp.bfloat16).astype(jnp.float32)
    h = jax.nn.gelu(pb @ w1b + params["b1"], approximate=True)
    ref = jnp.mean(h, axis=1) @ params["w2"] + params["b2"][0]

    assert feats.shape == (B, out_dim)
    assert jnp.allclose(feats, ref, atol=2e-3, rtol=2e-3), "mismatch vs reference"
    print("KERNEL_OK")
</pallas_src>

<mosaic_0001>
module attributes {stable_mosaic.version = 11 : i64} {
  func.func @_tile_encoder_kernel(%arg0: i32, %arg1: i32, %arg2: memref<1x16x128xbf16, #tpu.memory_space<vmem>>, %arg3: memref<128x128xbf16, #tpu.memory_space<vmem>>, %arg4: memref<1x128xf32, #tpu.memory_space<vmem>>, %arg5: memref<128x128xf32, #tpu.memory_space<vmem>>, %arg6: memref<1x128xf32, #tpu.memory_space<vmem>>, %arg7: memref<1x1x128xf32, #tpu.memory_space<vmem>>, %arg8: memref<1x128xf32, #tpu.memory_space<vmem>>) attributes {dimension_semantics = [#tpu.dimension_semantics<parallel>, #tpu.dimension_semantics<arbitrary>], iteration_bounds = array<i64: 2, 1>, scalar_prefetch = 0 : i64, scratch_operands = 1 : i64, tpu.core_type = #tpu.core_type<tc>, window_params = [{transform_indices = @transform_0, window_bounds = array<i64: 1, 16, 128>}, {pipeline_mode = #tpu.pipeline_mode<synchronous>, transform_indices = @transform_1, window_bounds = array<i64: 128, 128>}, {pipeline_mode = #tpu.pipeline_mode<synchronous>, transform_indices = @transform_2, window_bounds = array<i64: 1, 128>}, {pipeline_mode = #tpu.pipeline_mode<synchronous>, transform_indices = @transform_3, window_bounds = array<i64: 128, 128>}, {pipeline_mode = #tpu.pipeline_mode<synchronous>, transform_indices = @transform_4, window_bounds = array<i64: 1, 128>}, {transform_indices = @transform_5, window_bounds = array<i64: 1, 1, 128>}]} {
    %c0_i32 = arith.constant 0 : i32
    %0 = arith.cmpi eq, %arg1, %c0_i32 : i32
    %1 = arith.extui %0 : i1 to i32
    %c0_i32_0 = arith.constant 0 : i32
    %2 = arith.cmpi ne, %1, %c0_i32_0 : i32
    scf.if %2 {
      %cst_20 = arith.constant 0.000000e+00 : f32
      %41 = vector.broadcast %cst_20 : f32 to vector<1x128xf32>
      %c0_21 = arith.constant 0 : index
      %c0_22 = arith.constant 0 : index
      %42 = vector.load %arg8[%c0_21, %c0_22] : memref<1x128xf32, #tpu.memory_space<vmem>>, vector<1x128xf32>
      tpu.vector_store %arg8[%c0_21, %c0_22], %41 {strides = array<i32>} : memref<1x128xf32, #tpu.memory_space<vmem>>, vector<1x128xf32>,
    } else {
    }
    %c0 = arith.constant 0 : index
    %c0_1 = arith.constant 0 : index
    %c0_2 = arith.constant 0 : index
    %3 = vector.load %arg2[%c0, %c0_1, %c0_2] : memref<1x16x128xbf16, #tpu.memory_space<vmem>>, vector<1x16x128xbf16>
    %4 = vector.shape_cast %3 : vector<1x16x128xbf16> to vector<16x128xbf16>
    %c0_3 = arith.constant 0 : index
    %c0_4 = arith.constant 0 : index
    %5 = vector.load %arg3[%c0_3, %c0_4] : memref<128x128xbf16, #tpu.memory_space<vmem>>, vector<128x128xbf16>
    %cst = arith.constant dense<0.000000e+00> : vector<16x128xf32>
    %6 = tpu.matmul %4, %5, %cst {dimension_numbers = #tpu.dot_dimension_numbers<[1], [0], [0], [1], [0, 0, 1, 1], [], []>} : vector<16x128xbf16>, vector<128x128xbf16>, vector<16x128xf32> -> vector<16x128xf32>
    %c0_5 = arith.constant 0 : index
    %c0_6 = arith.constant 0 : index
    %7 = vector.load %arg4[%c0_5, %c0_6] : memref<1x128xf32, #tpu.memory_space<vmem>>, vector<1x128xf32>
    %8 = vector.broadcast %7 : vector<1x128xf32> to vector<16x128xf32>
    %9 = arith.addf %6, %8 : vector<16x128xf32>
    %10 = arith.mulf %9, %9 : vector<16x128xf32>
    %11 = arith.mulf %9, %10 : vector<16x128xf32>
    %cst_7 = arith.constant 4.471500e-02 : f32
    %12 = vector.broadcast %cst_7 : f32 to vector<16x128xf32>
    %13 = arith.mulf %12, %11 : vector<16x128xf32>
    %14 = arith.addf %9, %13 : vector<16x128xf32>
    %cst_8 = arith.constant 0.797884583 : f32
    %15 = vector.broadcast %cst_8 : f32 to vector<16x128xf32>
    %16 = arith.mulf %15, %14 : vector<16x128xf32>
    %17 = math.tanh %16 : vector<16x128xf32>
    %cst_9 = arith.constant 1.000000e+00 : f32
    %18 = vector.broadcast %cst_9 : f32 to vector<16x128xf32>
    %19 = arith.addf %18, %17 : vector<16x128xf32>
    %cst_10 = arith.constant 5.000000e-01 : f32
    %20 = vector.broadcast %cst_10 : f32 to vector<16x128xf32>
    %21 = arith.mulf %20, %19 : vector<16x128xf32>
    %22 = arith.mulf %9, %21 : vector<16x128xf32>
    %23 = tpu.iota {dimensions = array<i32: 0>} : vector<16x1xi32>
    %c16_i32 = arith.constant 16 : i32
    %24 = arith.muli %arg1, %c16_i32 : i32
    %25 = vector.broadcast %24 : i32 to vector<16x1xi32>
    %26 = arith.addi %25, %23 : vector<16x1xi32>
    %c16_i32_11 = arith.constant 16 : i32
    %27 = vector.broadcast %c16_i32_11 : i32 to vector<16x1xi32>
    %28 = arith.cmpi slt, %26, %27 : vector<16x1xi32>
    %cst_12 = arith.constant 0.000000e+00 : f32
    %29 = vector.shape_cast %28 : vector<16x1xi1> to vector<16x1xi1>
    %30 = vector.broadcast %29 : vector<16x1xi1> to vector<16x128xi1>
    %31 = vector.broadcast %cst_12 : f32 to vector<16x128xf32>
    %32 = arith.select %30, %22, %31 : vector<16x128xi1>, vector<16x128xf32>
    %c0_13 = arith.constant 0 : index
    %c0_14 = arith.constant 0 : index
    %33 = vector.load %arg8[%c0_13, %c0_14] : memref<1x128xf32, #tpu.memory_space<vmem>>, vector<1x128xf32>
    %cst_15 = arith.constant dense<0.000000e+00> : vector<128xf32>
    %34 = vector.multi_reduction <add>, %32, %cst_15 [0] : vector<16x128xf32> to vector<128xf32>
    %35 = vector.shape_cast %34 : vector<128xf32> to vector<1x128xf32>
    %36 = arith.addf %33, %35 : vector<1x128xf32>
    %c0_16 = arith.constant 0 : index
    %c0_17 = arith.constant 0 : index
    %37 = vector.load %arg8[%c0_16, %c0_17] : memref<1x128xf32, #tpu.memory_space<vmem>>, vector<1x128xf32>
    tpu.vector_store %arg8[%c0_16, %c0_17], %36 {strides = array<i32>} : memref<1x128xf32, #tpu.memory_space<vmem>>, vector<1x128xf32>,
    %c0_i32_18 = arith.constant 0 : i32
    %38 = arith.cmpi eq, %arg1, %c0_i32_18 : i32
    %39 = arith.extui %38 : i1 to i32
    %c0_i32_19 = arith.constant 0 : i32
    %40 = arith.cmpi ne, %39, %c0_i32_19 : i32
    scf.if %40 {
      %c0_20 = arith.constant 0 : index
      %c0_21 = arith.constant 0 : index
      %41 = vector.load %arg8[%c0_20, %c0_21] : memref<1x128xf32, #tpu.memory_space<vmem>>, vector<1x128xf32>
      %cst_22 = arith.constant 6.250000e-02 : f32
      %42 = vector.broadcast %cst_22 : f32 to vector<1x128xf32>
      %43 = arith.mulf %41, %42 : vector<1x128xf32>
      %c0_23 = arith.constant 0 : index
      %c0_24 = arith.constant 0 : index
      %44 = vector.load %arg5[%c0_23, %c0_24] : memref<128x128xf32, #tpu.memory_space<vmem>>, vector<128x128xf32>
      %cst_25 = arith.constant dense<0.000000e+00> : vector<1x128xf32>
      %45 = tpu.matmul %43, %44, %cst_25 {dimension_numbers = #tpu.dot_dimension_numbers<[1], [0], [0], [1], [0, 0, 1, 1], [], []>} : vector<1x128xf32>, vector<128x128xf32>, vector<1x128xf32> -> vector<1x128xf32>
      %c0_26 = arith.constant 0 : index
      %c0_27 = arith.constant 0 : index
      %46 = vector.load %arg6[%c0_26, %c0_27] : memref<1x128xf32, #tpu.memory_space<vmem>>, vector<1x128xf32>
      %47 = arith.addf %45, %46 : vector<1x128xf32>
      %c0_28 = arith.constant 0 : index
      %c0_29 = arith.constant 0 : index
      %c0_30 = arith.constant 0 : index
      %48 = vector.load %arg7[%c0_28, %c0_29, %c0_30] : memref<1x1x128xf32, #tpu.memory_space<vmem>>, vector<1x1x128xf32>
      %49 = vector.shape_cast %48 : vector<1x1x128xf32> to vector<1x128xf32>
      %50 = vector.shape_cast %47 : vector<1x128xf32> to vector<1x1x128xf32>
      tpu.vector_store %arg7[%c0_28, %c0_29, %c0_30], %50 {strides = array<i32>} : memref<1x1x128xf32, #tpu.memory_space<vmem>>, vector<1x1x128xf32>,
    } else {
    }
    return
  }
  func.func @transform_0(%arg0: i32, %arg1: i32) -> (i32, i32, i32) {
    %c0_i32 = arith.constant 0 : i32
    %c0_i32_0 = arith.constant 0 : i32
    return %arg0, %arg1, %c0_i32 : i32, i32, i32
  }
  func.func @transform_1(%arg0: i32, %arg1: i32) -> (i32, i32) {
    %c0_i32 = arith.constant 0 : i32
    %c0_i32_0 = arith.constant 0 : i32
    %c0_i32_1 = arith.constant 0 : i32
    return %c0_i32, %c0_i32_0 : i32, i32
  }
  func.func @transform_2(%arg0: i32, %arg1: i32) -> (i32, i32) {
    %c0_i32 = arith.constant 0 : i32
    %c0_i32_0 = arith.constant 0 : i32
    %c0_i32_1 = arith.constant 0 : i32
    return %c0_i32, %c0_i32_0 : i32, i32
  }
  func.func @transform_3(%arg0: i32, %arg1: i32) -> (i32, i32) {
    %c0_i32 = arith.constant 0 : i32
    %c0_i32_0 = arith.constant 0 : i32
    %c0_i32_1 = arith.constant 0 : i32
    return %c0_i32, %c0_i32_0 : i32, i32
  }
  func.func @transform_4(%arg0: i32, %arg1: i32) -> (i32, i32) {
    %c0_i32 = arith.constant 0 : i32
    %c0_i32_0 = arith.constant 0 : i32
    %c0_i32_1 = arith.constant 0 : i32
    return %c0_i32, %c0_i32_0 : i32, i32
  }
  func.func @transform_5(%arg0: i32, %arg1: i32) -> (i32, i32, i32) {
    %c0_i32 = arith.constant 0 : i32
    %c0_i32_0 = arith.constant 0 : i32
    %c0_i32_1 = arith.constant 0 : i32
    return %arg0, %c0_i32, %c0_i32_0 : i32, i32, i32
  }
}

</mosaic_0001>

<llo_original>
// kernel: tpu_custom_call.1
$region0: #{tpu_custom_call.1}
  #allocation0 [shape = 'u32[]', space=smem, size = 0x4, offset = 0x4, fixed_abs, tag = 'smem constant byte address 0x4 - core index']
  #allocation1 [shape = 'u32[144,128]{1,0:T(1,128)}', space=vmem, size = 0x12000, scoped, tag = 'internal scratch']
  #allocation2 [shape = 'f32[1,128]{1,0:T(1,128)}', space=vmem, size = 0x200, scoped, tag = 'scratch operand']
  %s0 = inlined_call_operand.hbm [shape: bf16[2,16,128], index: 0, kind: input, shape index: {}]
  %s1 = inlined_call_operand.hbm [shape: bf16[128,128], index: 1, kind: input, shape index: {}]
  %s2 = inlined_call_operand.vmem [shape: f32[1,128], index: 2, kind: input, shape index: {}]
  %s3 = inlined_call_operand.hbm [shape: f32[128,128], index: 3, kind: input, shape index: {}]
  %s4 = inlined_call_operand.vmem [shape: f32[1,128], index: 4, kind: input, shape index: {}]
  %s5 = inlined_call_operand.hbm [shape: f32[2,1,128], index: 5, kind: output, shape index: {}]
  %s6 = sld [smem:[#allocation0]]
  $region73: #{tpu_custom_call.1} parent=0
    _
  %s8 = ssub.s32 1, %s6
  %s9 = scalar_select 0, %s8, %s6
  $region1: #{tpu_custom_call.1} parent=0
    #allocation3 [shape = 'u8[8192]{0}', space=vmem, size = 0x2000, scoped, tag = 'input window, operand 0']
    #allocation4 [shape = 's32[2]{0}', space=sflag, size = 0x8, scoped, tag = 'scoped memory for tpu_custom_call.1']
    #allocation5 [shape = 's32[2]{0}', space=sflag, size = 0x8, scoped, tag = 'scoped memory for tpu_custom_call.1']
    #allocation6 [shape = 'u8[32768]{0}', space=vmem, size = 0x8000, scoped, tag = 'input window, operand 1, single buffered']
    #allocation7 [shape = 's32[1]{0}', space=sflag, size = 0x4, scoped, tag = 'scoped memory for tpu_custom_call.1']
    #allocation8 [shape = 'u8[65536]{0}', space=vmem, size = 0x10000, scoped, tag = 'input window, operand 3, single buffered']
    #allocation9 [shape = 'u8[1024]{0}', space=vmem, size = 0x400, scoped, tag = 'output window, operand 0']
    %10 = vsyncpa [#allocation4], 0
    %s11 = scalar_lea.sflag [#allocation4], 1
    %12 = vsyncpa %s11, 0
    %13 = vsyncpa [#allocation7], 0
    %14 = vsyncpa [#allocation5], 0
    %s15 = scalar_lea.sflag [#allocation5], 1
    %16 = vsyncpa %s15, 0
    loop: start=0, step=1, limit=4
    $region2: #{tpu_custom_call.1} parent=1 // loop_pre_header
      _
    $region3: #{tpu_custom_call.1} parent=1 // loop_header
      %s18 = sphi 0, %s22
      %p19 = scmp.ge.s32.totalorder %s18, 4
      %s25 = sphi 0, %s37
      %s26 = sphi 0, %s33
      %s27 = sphi 0, %s25
      %s28 = sphi 0, %s26
      %s29 = sphi 0, %s27
      %s30 = sphi 0, %s28
      %s42 = sphi 0, %s44
      %s45 = sphi 0, %s42
      %s46 = sphi 0, %s45
      %s62 = sphi 0, %s46
      %s66 = sphi 0, %s66
      %s68 = sphi 0, %s66
      %s69 = sphi 0, %s68
      %s83 = sphi 0, %s69
      %s87 = sphi 0, %s87
      %s89 = sphi 0, %s87
      %s90 = sphi 0, %s89
      %s104 = sphi 0, %s90
      %s108 = sphi 0, %s108
      %s110 = sphi 0, %s108
      %s111 = sphi 0, %s110
      %s125 = sphi 0, %s111
      %s129 = sphi 0, %s129
      %s131 = sphi 0, %s129
      %s132 = sphi 0, %s131
      %s146 = sphi 0, %s132
      %s152 = sphi 0, %s154
      %s155 = sphi 0, %s152
      %s156 = sphi 0, %s155
      %s172 = sphi 0, %s156
    $region4: #{tpu_custom_call.1} parent=1 // loop_header_branch
      %21 = sbr.rel (%p19) target = $region8
    $region5: #{tpu_custom_call.1} parent=1 // loop_body
      %s23 = ssub.s32 %s18, 1
      %s24 = ssub.s32 %s18, 2
      %s31 = sadd.s32 1, %s26
      %p32 = scmp.ge.s32.totalorder %s31, 1
      %s33 = scalar_select %p32, 0, %s31
      %s34 = sadd.s32 1, %s25
      %s35 = scalar_select %p32, %s34, %s25
      %p36 = scmp.ge.s32.totalorder %s35, 2
      %s37 = scalar_select %p36, 0, %s35
      %s38 = ssub.s32 %s25, %s37
      %s39 = ssub.s32 %s26, %s33
      %s40 = sor.u32 %s38, %s39
      %p41 = scmp.eq.s32.totalorder %s40, 0
      %s43 = sadd.s32 %s42, 1
      %s44 = scalar_select %p41, %s42, %s43
      %p47 = pneg %p41
      %p48 = scmp.eq.s32.totalorder %s18, 1
      %p49 = por %p47, %p48
      %p50 = scmp.ne.s32.totalorder %s42, %s45
      %p51 = scmp.eq.s32.totalorder %s18, 0
      %p52 = por %p50, %p51
      %p53 = scmp.ne.s32.totalorder %s42, %s45
      %p54 = scmp.eq.s32.totalorder %s23, 1
      %p55 = por %p53, %p54
      %p56 = scmp.ne.s32.totalorder %s45, %s46
      %p57 = scmp.eq.s32.totalorder %s23, 0
      %p58 = por %p56, %p57
      %p59 = scmp.ne.s32.totalorder %s45, %s46
      %p60 = scmp.eq.s32.totalorder %s24, 1
      %p61 = por %p59, %p60
      %p63 = scmp.ne.s32.totalorder %s46, %s62
      %p64 = scmp.eq.s32.totalorder %s24, 0
      %p65 = por %p63, %p64
      %s67 = sadd.s32 %s66, 1
      %p70 = scmp.eq.s32.totalorder %s18, 1
      %p71 = scmp.ne.s32.totalorder %s66, %s68
      %p72 = scmp.eq.s32.totalorder %s18, 0
      %p73 = por %p71, %p72
      %p74 = scmp.ne.s32.totalorder %s66, %s68
      %p75 = scmp.eq.s32.totalorder %s23, 1
      %p76 = por %p74, %p75
      %p77 = scmp.ne.s32.totalorder %s68, %s69
      %p78 = scmp.eq.s32.totalorder %s23, 0
      %p79 = por %p77, %p78
      %p80 = scmp.ne.s32.totalorder %s68, %s69
      %p81 = scmp.eq.s32.totalorder %s24, 1
      %p82 = por %p80, %p81
      %p84 = scmp.ne.s32.totalorder %s69, %s83
      %p85 = scmp.eq.s32.totalorder %s24, 0
      %p86 = por %p84, %p85
      %s88 = sadd.s32 %s87, 1
      %p91 = scmp.eq.s32.totalorder %s18, 1
      %p92 = scmp.ne.s32.totalorder %s87, %s89
      %p93 = scmp.eq.s32.totalorder %s18, 0
      %p94 = por %p92, %p93
      %p95 = scmp.ne.s32.totalorder %s87, %s89
      %p96 = scmp.eq.s32.totalorder %s23, 1
      %p97 = por %p95, %p96
      %p98 = scmp.ne.s32.totalorder %s89, %s90
      %p99 = scmp.eq.s32.totalorder %s23, 0
      %p100 = por %p98, %p99
      %p101 = scmp.ne.s32.totalorder %s89, %s90
      %p102 = scmp.eq.s32.totalorder %s24, 1
      %p103 = por %p101, %p102
      %p105 = scmp.ne.s32.totalorder %s90, %s104
      %p106 = scmp.eq.s32.totalorder %s24, 0
      %p107 = por %p105, %p106
      %s109 = sadd.s32 %s108, 1
      %p112 = scmp.eq.s32.totalorder %s18, 1
      %p113 = scmp.ne.s32.totalorder %s108, %s110
      %p114 = scmp.eq.s32.totalorder %s18, 0
      %p115 = por %p113, %p114
      %p116 = scmp.ne.s32.totalorder %s108, %s110
      %p117 = scmp.eq.s32.totalorder %s23, 1
      %p118 = por %p116, %p117
      %p119 = scmp.ne.s32.totalorder %s110, %s111
      %p120 = scmp.eq.s32.totalorder %s23, 0
      %p121 = por %p119, %p120
      %p122 = scmp.ne.s32.totalorder %s110, %s111
      %p123 = scmp.eq.s32.totalorder %s24, 1
      %p124 = por %p122, %p123
      %p126 = scmp.ne.s32.totalorder %s111, %s125
      %p127 = scmp.eq.s32.totalorder %s24, 0
      %p128 = por %p126, %p127
      %s130 = sadd.s32 %s129, 1
      %p133 = scmp.eq.s32.totalorder %s18, 1
      %p134 = scmp.ne.s32.totalorder %s129, %s131
      %p135 = scmp.eq.s32.totalorder %s18, 0
      %p136 = por %p134, %p135
      %p137 = scmp.ne.s32.totalorder %s129, %s131
      %p138 = scmp.eq.s32.totalorder %s23, 1
      %p139 = por %p137, %p138
      %p140 = scmp.ne.s32.totalorder %s131, %s132
      %p141 = scmp.eq.s32.totalorder %s23, 0
      %p142 = por %p140, %p141
      %p143 = scmp.ne.s32.totalorder %s131, %s132
      %p144 = scmp.eq.s32.totalorder %s24, 1
      %p145 = por %p143, %p144
      %p147 = scmp.ne.s32.totalorder %s132, %s146
      %p148 = scmp.eq.s32.totalorder %s24, 0
      %p149 = por %p147, %p148
      %s150 = ssub.s32 %s25, %s37
      %p151 = scmp.eq.s32.totalorder %s150, 0
      %s153 = sadd.s32 %s152, 1
      %s154 = scalar_select %p151, %s152, %s153
      %p157 = pneg %p151
      %p158 = scmp.eq.s32.totalorder %s18, 1
      %p159 = por %p157, %p158
      %p160 = scmp.ne.s32.totalorder %s152, %s155
      %p161 = scmp.eq.s32.totalorder %s18, 0
      %p162 = por %p160, %p161
      %p163 = scmp.ne.s32.totalorder %s152, %s155
      %p164 = scmp.eq.s32.totalorder %s23, 1
      %p165 = por %p163, %p164
      %p166 = scmp.ne.s32.totalorder %s155, %s156
      %p167 = scmp.eq.s32.totalorder %s23, 0
      %p168 = por %p166, %p167
      %p169 = scmp.ne.s32.totalorder %s155, %s156
      %p170 = scmp.eq.s32.totalorder %s24, 1
      %p171 = por %p169, %p170
      %p173 = scmp.ne.s32.totalorder %s156, %s172
      %p174 = scmp.eq.s32.totalorder %s24, 0
      %p175 = por %p173, %p174
      %p176 = scmp.le.s32.totalorder 1, %s18
      %p177 = scmp.lt.s32.totalorder %s18, 3
      %p178 = pnand %p176, %p177
      %p179 = pneg %p178
      // Predicated region
      $region9: #{tpu_custom_call.1} parent=5 // pred_check
        _
      $region10: #{tpu_custom_call.1} parent=5 // pred_check_branch
        %181 = sbr.rel (%p178) target = $region12
      $region11: #{tpu_custom_call.1} parent=5 // pred_region
        %s182 = ssub.s32 %s18, 1
        // Predicated region
        $region13: #{tpu_custom_call.1} parent=11 // pred_check
          %p183 = pneg %p79
        $region14: #{tpu_custom_call.1} parent=11 // pred_check_branch
          %185 = sbr.rel (%p183) target = $region16
        $region15: #{tpu_custom_call.1} parent=11 // pred_region
          %s187 = ssub.s32 1024, 1024
          %188 = vsyncadd [#allocation7], %s187
          %s189 = sshll.u32 [#allocation6], 4
          %s190 = int_to_ptr.vmem [resolvable:$true] %s189
          %195 = dma.hbm_to_vmem [thread:$0]  %s1, 1024, %s190, [#allocation7], 64, 64, 4
        $region16: #{tpu_custom_call.1} parent=11 // pred_fallthru
          _
        // Predicated region
        $region17: #{tpu_custom_call.1} parent=11 // pred_check
          %p196 = pneg %p100
        $region18: #{tpu_custom_call.1} parent=11 // pred_check_branch
          %198 = sbr.rel (%p196) target = $region20
        $region19: #{tpu_custom_call.1} parent=11 // pred_region
          _
        $region20: #{tpu_custom_call.1} parent=11 // pred_fallthru
          _
        // Predicated region
        $region21: #{tpu_custom_call.1} parent=11 // pred_check
          %p199 = pneg %p121
        $region22: #{tpu_custom_call.1} parent=11 // pred_check_branch
          %201 = sbr.rel (%p199) target = $region24
        $region23: #{tpu_custom_call.1} parent=11 // pred_region
          %s203 = ssub.s32 2048, 2048
          %204 = vsyncadd [#allocation7], %s203
          %s205 = sshll.u32 [#allocation8], 4
          %s206 = int_to_ptr.vmem [resolvable:$true] %s205
          %211 = dma.hbm_to_vmem [thread:$0]  %s3, 2048, %s206, [#allocation7], 128, 128, 8
        $region24: #{tpu_custom_call.1} parent=11 // pred_fallthru
          _
        // Predicated region
        $region25: #{tpu_custom_call.1} parent=11 // pred_check
          %p212 = pneg %p142
        $region26: #{tpu_custom_call.1} parent=11 // pred_check_branch
          %214 = sbr.rel (%p212) target = $region28
        $region27: #{tpu_custom_call.1} parent=11 // pred_region
          _
        $region28: #{tpu_custom_call.1} parent=11 // pred_fallthru
          _
      $region12: #{tpu_custom_call.1} parent=5 // pred_fallthru
        _
      %p215 = scmp.lt.s32.totalorder %s18, 2
      // Predicated region
      $region29: #{tpu_custom_call.1} parent=5 // pred_check
        %p216 = pneg %p215
      $region30: #{tpu_custom_call.1} parent=5 // pred_check_branch
        %218 = sbr.rel (%p216) target = $region32
      $region31: #{tpu_custom_call.1} parent=5 // pred_region
        // Predicated region
        $region33: #{tpu_custom_call.1} parent=31 // pred_check
          %p219 = pneg %p52
        $region34: #{tpu_custom_call.1} parent=31 // pred_check_branch
          %221 = sbr.rel (%p219) target = $region36
        $region35: #{tpu_custom_call.1} parent=31 // pred_region
          %s222 = sand.u32 %s42, 1
          %s223 = scalar_lea.sflag [#allocation4], %s222
          %s224 = sand.u32 %s42, 1
          %s225 = smul.addr %s224, 8
          %s226 = scalar_lea.vmem [#allocation3], %s225
          %s227 = smul.u32 2, %s26
          %s229 = ssub.s32 128, 128
          %230 = vsyncadd %s223, %s229
          %s231 = smul.addr %s25, 2
          %s232 = sadd.s32 %s227, %s231
          %s233 = smul.addr %s232, 64
          %s234 = scalar_lea.hbm %s0, %s233
          %s235 = sshll.u32 %s226, 4
          %s236 = int_to_ptr.vmem [resolvable:$true] %s235
          %241 = dma.hbm_to_vmem [thread:$0]  %s234, 128, %s236, %s223, 64, 64, 4
        $region36: #{tpu_custom_call.1} parent=31 // pred_fallthru
          _
      $region32: #{tpu_custom_call.1} parent=5 // pred_fallthru
        _
      %p242 = scmp.le.s32.totalorder 1, %s18
      %p243 = scmp.lt.s32.totalorder %s18, 3
      %p244 = pnand %p242, %p243
      %p245 = pneg %p244
      // Predicated region
      $region37: #{tpu_custom_call.1} parent=5 // pred_check
        _
      $region38: #{tpu_custom_call.1} parent=5 // pred_check_branch
        %247 = sbr.rel (%p244) target = $region40
      $region39: #{tpu_custom_call.1} parent=5 // pred_region
        %s248 = ssub.s32 %s18, 1
        %s249 = sand.u32 %s45, 1
        %s250 = scalar_lea.sflag [#allocation4], %s249
        %s251 = sand.u32 %s45, 1
        %s252 = smul.addr %s251, 8
        %s253 = scalar_lea.vmem [#allocation3], %s252
        // Predicated region
        $region41: #{tpu_custom_call.1} parent=39 // pred_check
          %p254 = pneg %p58
        $region42: #{tpu_custom_call.1} parent=39 // pred_check_branch
          %256 = sbr.rel (%p254) target = $region44
        $region43: #{tpu_custom_call.1} parent=39 // pred_region
          %257 = dma.done %s250, 128
        $region44: #{tpu_custom_call.1} parent=39 // pred_fallthru
          _
        // Predicated region
        $region45: #{tpu_custom_call.1} parent=39 // pred_check
          %p258 = pneg %p79
        $region46: #{tpu_custom_call.1} parent=39 // pred_check_branch
          %260 = sbr.rel (%p258) target = $region48
        $region47: #{tpu_custom_call.1} parent=39 // pred_region
          %261 = dma.done [#allocation7], 1024
        $region48: #{tpu_custom_call.1} parent=39 // pred_fallthru
          _
        // Predicated region
        $region49: #{tpu_custom_call.1} parent=39 // pred_check
          %p262 = pneg %p121
        $region50: #{tpu_custom_call.1} parent=39 // pred_check_branch
          %264 = sbr.rel (%p262) target = $region52
        $region51: #{tpu_custom_call.1} parent=39 // pred_region
          %265 = dma.done [#allocation7], 2048
        $region52: #{tpu_custom_call.1} parent=39 // pred_fallthru
          _
        %s266 = sand.u32 %s45, 1
        %s267 = scalar_lea.sflag [#allocation4], %s266
        %s268 = sand.u32 %s45, 1
        %s269 = smul.addr %s268, 8
        %s270 = scalar_lea.vmem [#allocation3], %s269
        %p271 = pneg %p58
        %p272 = pneg %p55
        %p273 = pneg %p79
        %p274 = pneg %p76
        %p275 = pneg %p100
        %p276 = pneg %p97
        %p277 = pneg %p121
        %p278 = pneg %p118
        %p279 = pneg %p142
        %p280 = pneg %p139
        %p281 = pneg %p168
        %p282 = pneg %p165
        %s283 = sand.u32 %s155, 1
        %s284 = scalar_lea.sflag [#allocation5], %s283
        %s285 = sand.u32 %s155, 1
        %s286 = scalar_lea.vmem [#allocation9], %s285
        %s287 = smul.u32 2, %s28
        %p289 = scmp.eq.s32.totalorder %s28, 0
        // Predicated region
        $region53: #{tpu_custom_call.1} parent=39 // pred_check
          %p290 = pneg %p289
        $region54: #{tpu_custom_call.1} parent=39 // pred_check_branch
          %292 = sbr.rel (%p290) target = $region56
        $region55: #{tpu_custom_call.1} parent=39 // pred_region
          %293 = vst [vmem:[#allocation2] sm:$0x1] 0.0
        $region56: #{tpu_custom_call.1} parent=39 // pred_fallthru
          _
        %v294 = vld [vmem:[%s253] sm:$0xf]
        %v295 = vld [vmem:[%s253 + $0x4] sm:$0xf]
        %v296 = vld [vmem:[#allocation6] sm:$0xf]
        %v297 = vld [vmem:[#allocation6 + $0x4] sm:$0xf]
        %v298 = vld [vmem:[#allocation6 + $0x8] sm:$0xf]
        %v299 = vld [vmem:[#allocation6 + $0xc] sm:$0xf]
        %v300 = vld [vmem:[#allocation6 + $0x10] sm:$0xf]
        %v301 = vld [vmem:[#allocation6 + $0x14] sm:$0xf]
        %v302 = vld [vmem:[#allocation6 + $0x18] sm:$0xf]
        %v303 = vld [vmem:[#allocation6 + $0x1c] sm:$0xf]
        %v304 = vld [vmem:[#allocation6 + $0x20] sm:$0xf]
        %v305 = vld [vmem:[#allocation6 + $0x24] sm:$0xf]
        %v306 = vld [vmem:[#allocation6 + $0x28] sm:$0xf]
        %v307 = vld [vmem:[#allocation6 + $0x2c] sm:$0xf]
        %v308 = vld [vmem:[#allocation6 + $0x30] sm:$0xf]
        %v309 = vld [vmem:[#allocation6 + $0x34] sm:$0xf]
        %v310 = vld [vmem:[#allocation6 + $0x38] sm:$0xf]
        %v311 = vld [vmem:[#allocation6 + $0x3c] sm:$0xf]
        %v312 = vld [vmem:[%s2] sm:$0x1]
        %v314 = vlaneseq
        %v315 = vshrl.u32 %v314, 7
        %v316 = vsub.s32 0, %v315
        %v317 = vrot.slane %v312, %v316
        %v321 = vunpack.c.l.b16 %v294
        %v322 = vunpack.c.l.b16 %v295
        %v323 = vpack.c.b16 %v322, %v321
        %v341 = vunpack.c.l.b16 %v296
        %v342 = vunpack.c.l.b16 %v297
        %v343 = vunpack.c.l.b16 %v298
        %v344 = vunpack.c.l.b16 %v299
        %v345 = vunpack.c.l.b16 %v300
        %v346 = vunpack.c.l.b16 %v301
        %v347 = vunpack.c.l.b16 %v302
        %v348 = vunpack.c.l.b16 %v303
        %v349 = vunpack.c.l.b16 %v304
        %v350 = vunpack.c.l.b16 %v305
        %v351 = vunpack.c.l.b16 %v306
        %v352 = vunpack.c.l.b16 %v307
        %v353 = vunpack.c.l.b16 %v308
        %v354 = vunpack.c.l.b16 %v309
        %v355 = vunpack.c.l.b16 %v310
        %v356 = vunpack.c.l.b16 %v311
        %v357 = vpack.c.b16 %v342, %v341
        %v358 = vpack.c.b16 %v344, %v343
        %v359 = vpack.c.b16 %v346, %v345
        %v360 = vpack.c.b16 %v348, %v347
        %v361 = vpack.c.b16 %v350, %v349
        %v362 = vpack.c.b16 %v352, %v351
        %v363 = vpack.c.b16 %v354, %v353
        %v364 = vpack.c.b16 %v356, %v355
        %373 = vmatprep.subr.bf16.mxu0 0
        %374 = vmatpush1.bf16.msra.mxu0 %v364
        %375 = vmatprep.subr.bf16.mxu0 0
        %376 = vmatpush1.bf16.msra.mxu0 %v363
        %377 = vmatprep.subr.bf16.mxu0 0
        %378 = vmatpush1.bf16.msra.mxu0 %v362
        %379 = vmatprep.subr.bf16.mxu0 0
        %380 = vmatpush1.bf16.msra.mxu0 %v361
        %381 = vmatprep.subr.bf16.mxu0 0
        %382 = vmatpush1.bf16.msra.mxu0 %v360
        %383 = vmatprep.subr.bf16.mxu0 0
        %384 = vmatpush1.bf16.msra.mxu0 %v359
        %385 = vmatprep.subr.bf16.mxu0 0
        %386 = vmatpush1.bf16.msra.mxu0 %v358
        %387 = vmatprep.subr.bf16.mxu0 0
        %388 = vmatpush1.bf16.msra.mxu0 %v357
        %389 = vmatprep.subr.bf16.mxu0 0
        %390 = vmatpush2.bf16.msra.mxu0 0
        %391 = vmatprep.subr.bf16.mxu0 0
        %392 = vmatpush2.bf16.msra.mxu0 0
        %393 = vmatprep.subr.bf16.mxu0 0
        %394 = vmatpush2.bf16.msra.mxu0 0
        %395 = vmatprep.subr.bf16.mxu0 0
        %396 = vmatpush2.bf16.msra.mxu0 0
        %397 = vmatprep.subr.bf16.mxu0 0
        %398 = vmatpush2.bf16.msra.mxu0 0
        %399 = vmatprep.subr.bf16.mxu0 0
        %400 = vmatpush2.bf16.msra.mxu0 0
        %401 = vmatprep.subr.bf16.mxu0 0
        %402 = vmatpush2.bf16.msra.mxu0 0
        %403 = vmatprep.subr.bf16.mxu0 0
        %404 = vmatpush2.bf16.msra.mxu0 0
        %405 = vmatprep.mubr.bf16.mxu0 0
        %406 = vmatmul.mubr.bf16.gmra.mxu0 %v323
        %v407 = vpop.f32.mrf.mxu0
        %v408 = vadd.f32 %v317, %v407
        %v409 = vpop.f32.mrf.mxu0
        %v410 = vpop.f32.mrf.mxu0
        %v411 = vadd.f32 %v317, %v410
        %v412 = vpop.f32.mrf.mxu0
        %413 = vdwg.mxu0
        %v414 = vmul.f32 %v408, %v408
        %v415 = vmul.f32 %v411, %v411
        %v416 = vmul.f32 %v408, %v414
        %v417 = vmul.f32 %v411, %v415
        %v418 = vmul.f32 %v416, 0.044715
        %v419 = vmul.f32 %v417, 0.044715
        %v420 = vadd.f32 %v408, %v418
        %v421 = vadd.f32 %v411, %v419
        %v422 = vmul.f32 %v420, 0.7978846
        %v423 = vmul.f32 %v421, 0.7978846
        %v424 = vtanh.pop %v422
        %v425 = vtanh.pop %v423
        %v426 = vadd.f32 %v424, 1.0
        %v427 = vadd.f32 %v425, 1.0
        %v428 = vmul.f32 %v426, 0.5
        %v429 = vmul.f32 %v427, 0.5
        %v430 = vmul.f32 %v408, %v428
        %v431 = vmul.f32 %v411, %v429
        %v432 = vlaneseq
        %v433 = vshrl.u32 %v432, 7
        %v434 = vadd.s32 %v433, 8
        %s435 = smul.u32 %s28, 16
        %v436 = vstv %s435
        %v437 = vadd.s32 %v436, %v433
        %v438 = vadd.s32 %v436, %v434
        %vm439 = vcmp.lt.s32.totalorder %v437, 16
        %vm440 = vcmp.lt.s32.totalorder %v438, 16
        %v441 = vsel %vm439, 1, 0
        %v442 = vsel %vm440, 1, 0
        %vm443 = vcmp.eq.s32.totalorder %v441, 1
        %vm444 = vcmp.eq.s32.totalorder %v442, 1
        %v445 = vsel %vm443, %v430, 0.0
        %v446 = vsel %vm444, %v431, 0.0
        %v447 = vld [vmem:[#allocation2] sm:$0x1]
        %v448 = vadd.f32 %v445, %v446
        %v449 = vrot.slane %v448, 4
        %v450 = vadd.f32 %v448, %v449
        %v451 = vrot.slane %v450, 2
        %v452 = vadd.f32 %v450, %v451
        %v453 = vrot.slane %v452, 1
        %v454 = vadd.f32 %v452, %v453
        %v455 = vadd.f32 %v447, %v454
        %456 = vst [vmem:[#allocation2] sm:$0x1] %v455
        // Predicated region
        $region57: #{tpu_custom_call.1} parent=39 // pred_check
          %p457 = pneg %p289
        $region58: #{tpu_custom_call.1} parent=39 // pred_check_branch
          %459 = sbr.rel (%p457) target = $region60
        $region59: #{tpu_custom_call.1} parent=39 // pred_region
          %v460 = vld [vmem:[#allocation2] sm:$0x1]
          %v461 = vmul.f32 %v460, 0.0625
          %v462 = vld [vmem:[#allocation8] sm:$0xff]
          %v463 = vld [vmem:[#allocation8 + $0x8] sm:$0xff]
          %v464 = vld [vmem:[#allocation8 + $0x10] sm:$0xff]
          %v465 = vld [vmem:[#allocation8 + $0x18] sm:$0xff]
          %v466 = vld [vmem:[#allocation8 + $0x20] sm:$0xff]
          %v467 = vld [vmem:[#allocation8 + $0x28] sm:$0xff]
          %v468 = vld [vmem:[#allocation8 + $0x30] sm:$0xff]
          %v469 = vld [vmem:[#allocation8 + $0x38] sm:$0xff]
          %v470 = vld [vmem:[#allocation8 + $0x40] sm:$0xff]
          %v471 = vld [vmem:[#allocation8 + $0x48] sm:$0xff]
          %v472 = vld [vmem:[#allocation8 + $0x50] sm:$0xff]
          %v473 = vld [vmem:[#allocation8 + $0x58] sm:$0xff]
          %v474 = vld [vmem:[#allocation8 + $0x60] sm:$0xff]
          %v475 = vld [vmem:[#allocation8 + $0x68] sm:$0xff]
          %v476 = vld [vmem:[#allocation8 + $0x70] sm:$0xff]
          %v477 = vld [vmem:[#allocation8 + $0x78] sm:$0xff]
          %v478 = vld [vmem:[%s4] sm:$0x1]
          %479 = vmatprep.subr.mxu0 0.0
          %480 = vmatpush1.msra.mxu0 %v477
          %481 = vmatprep.subr.mxu0 0.0
          %482 = vmatpush1.msra.mxu0 %v476
          %483 = vmatprep.subr.mxu0 0.0
          %484 = vmatpush1.msra.mxu0 %v475
          %485 = vmatprep.subr.mxu0 0.0
          %486 = vmatpush1.msra.mxu0 %v474
          %487 = vmatprep.subr.mxu0 0.0
          %488 = vmatpush1.msra.mxu0 %v473
          %489 = vmatprep.subr.mxu0 0.0
          %490 = vmatpush1.msra.mxu0 %v472
          %491 = vmatprep.subr.mxu0 0.0
          %492 = vmatpush1.msra.mxu0 %v471
          %493 = vmatprep.subr.mxu0 0.0
          %494 = vmatpush1.msra.mxu0 %v470
          %495 = vmatprep.subr.mxu0 0.0
          %496 = vmatpush1.msra.mxu0 %v469
          %497 = vmatprep.subr.mxu0 0.0
          %498 = vmatpush1.msra.mxu0 %v468
          %499 = vmatprep.subr.mxu0 0.0
          %500 = vmatpush1.msra.mxu0 %v467
          %501 = vmatprep.subr.mxu0 0.0
          %502 = vmatpush1.msra.mxu0 %v466
          %503 = vmatprep.subr.mxu0 0.0
          %504 = vmatpush1.msra.mxu0 %v465
          %505 = vmatprep.subr.mxu0 0.0
          %506 = vmatpush1.msra.mxu0 %v464
          %507 = vmatprep.subr.mxu0 0.0
          %508 = vmatpush1.msra.mxu0 %v463
          %509 = vmatprep.subr.mxu0 0.0
          %510 = vmatpush1.msra.mxu0 %v462
          %511 = vmatprep.subr.mxu0 0.0
          %512 = vmatpush2.msra.mxu0 0.0
          %513 = vmatprep.subr.mxu0 0.0
          %514 = vmatpush2.msra.mxu0 0.0
          %515 = vmatprep.subr.mxu0 0.0
          %516 = vmatpush2.msra.mxu0 0.0
          %517 = vmatprep.subr.mxu0 0.0
          %518 = vmatpush2.msra.mxu0 0.0
          %519 = vmatprep.subr.mxu0 0.0
          %520 = vmatpush2.msra.mxu0 0.0
          %521 = vmatprep.subr.mxu0 0.0
          %522 = vmatpush2.msra.mxu0 0.0
          %523 = vmatprep.subr.mxu0 0.0
          %524 = vmatpush2.msra.mxu0 0.0
          %525 = vmatprep.subr.mxu0 0.0
          %526 = vmatpush2.msra.mxu0 0.0
          %527 = vmatprep.subr.mxu0 0.0
          %528 = vmatpush2.msra.mxu0 0.0
          %529 = vmatprep.subr.mxu0 0.0
          %530 = vmatpush2.msra.mxu0 0.0
          %531 = vmatprep.subr.mxu0 0.0
          %532 = vmatpush2.msra.mxu0 0.0
          %533 = vmatprep.subr.mxu0 0.0
          %534 = vmatpush2.msra.mxu0 0.0
          %535 = vmatprep.subr.mxu0 0.0
          %536 = vmatpush2.msra.mxu0 0.0
          %537 = vmatprep.subr.mxu0 0.0
          %538 = vmatpush2.msra.mxu0 0.0
          %539 = vmatprep.subr.mxu0 0.0
          %540 = vmatpush2.msra.mxu0 0.0
          %541 = vmatprep.subr.mxu0 0.0
          %542 = vmatpush2.msra.mxu0 0.0
          %543 = vmatprep.mubr.f32.mxu0 0.0
          %544 = vmatmul.mubr.f32.gmra.mxu0 %v461
          %v545 = vpop.f32.mrf.mxu0
          %v546 = vadd.f32 %v478, %v545
          %v547 = vpop.f32.mrf.mxu0
          %548 = vdwg.mxu0
          %549 = vst [vmem:[%s286] sm:$0x1] %v546
        $region60: #{tpu_custom_call.1} parent=39 // pred_fallthru
          _
        %s550 = sand.u32 %s155, 1
        %s551 = scalar_lea.sflag [#allocation5], %s550
        %s552 = sand.u32 %s155, 1
        %s553 = scalar_lea.vmem [#allocation9], %s552
        // Predicated region
        $region61: #{tpu_custom_call.1} parent=39 // pred_check
          %p554 = pneg %p165
        $region62: #{tpu_custom_call.1} parent=39 // pred_check_branch
          %556 = sbr.rel (%p554) target = $region64
        $region63: #{tpu_custom_call.1} parent=39 // pred_region
          %s558 = ssub.s32 16, 16
          %559 = vsyncadd %s551, %s558
          %s560 = smul.addr %s27, 16
          %s561 = scalar_lea.hbm %s5, %s560
          %s563 = sshll.u32 %s553, 4
          %s564 = int_to_ptr.vmem [resolvable:$true] %s563
          %566 = dma.vmem_to_hbm [thread:$0]  %s564, 16, %s561, %s551
        $region64: #{tpu_custom_call.1} parent=39 // pred_fallthru
          _
      $region40: #{tpu_custom_call.1} parent=5 // pred_fallthru
        _
      %p567 = scmp.le.s32.totalorder 2, %s18
      // Predicated region
      $region65: #{tpu_custom_call.1} parent=5 // pred_check
        %p568 = pneg %p567
      $region66: #{tpu_custom_call.1} parent=5 // pred_check_branch
        %570 = sbr.rel (%p568) target = $region68
      $region67: #{tpu_custom_call.1} parent=5 // pred_region
        %s571 = ssub.s32 %s18, 2
        // Predicated region
        $region69: #{tpu_custom_call.1} parent=67 // pred_check
          %p572 = pneg %p171
        $region70: #{tpu_custom_call.1} parent=67 // pred_check_branch
          %574 = sbr.rel (%p572) target = $region72
        $region71: #{tpu_custom_call.1} parent=67 // pred_region
          %s575 = sand.u32 %s156, 1
          %s576 = scalar_lea.sflag [#allocation5], %s575
          %s577 = sand.u32 %s156, 1
          %s578 = scalar_lea.vmem [#allocation9], %s577
          %579 = dma.done %s576, 16
        $region72: #{tpu_custom_call.1} parent=67 // pred_fallthru
          _
      $region68: #{tpu_custom_call.1} parent=5 // pred_fallthru
        _
    $region6: #{tpu_custom_call.1} parent=1 // loop_footer
      %s22 = sadd.s32 1, %s18
    $region7: #{tpu_custom_call.1} parent=1 // loop_footer_branch
      %17 = sbr.rel target = $region3
    $region8: #{tpu_custom_call.1} parent=1 // loop_exit
      _
    %580 = vsyncpa [#allocation4], 1
    %s581 = scalar_lea.sflag [#allocation4], 1
    %582 = vsyncpa %s581, 1
    %583 = vsyncpa [#allocation7], 1
    %584 = vsyncpa [#allocation5], 1
    %s585 = scalar_lea.sflag [#allocation5], 1
    %586 = vsyncpa %s585, 1

</llo_original>
